<compile_context>
chip_gen: v5e
topology: v5e:2x2
jax: 0.10.0
libtpu: 0.0.40
codegen_flags: <defaults>
</compile_context>

<pallas_src>
import functools

import jax
import jax.numpy as jnp
from jax.experimental import pallas as pl
from jax.experimental.pallas import tpu as pltpu


def _standardize_kernel(x_ref, o_ref, *, n_valid: int):
    # x_ref / o_ref: (TB, Fp) tile, Fp a multiple of 128; rows beyond the real
    # batch and lanes beyond n_valid are zero-padded by the wrapper.
    x = x_ref[...].astype(jnp.float32)
    tb, fp = x.shape

    inv_n = 1.0 / float(n_valid)
    # Padded lanes hold zeros, so the plain row sum already equals the sum
    # over the n_valid real elements.
    mean = jnp.sum(x, axis=-1, keepdims=True) * inv_n          # (TB, 1)
    diff = x - mean
    if fp != n_valid:
        # Mask padded lanes out of the variance (diff there would be -mean).
        lane = jax.lax.broadcasted_iota(jnp.int32, (tb, fp), 1)
        diff = jnp.where(lane < n_valid, diff, 0.0)

    # torch.var default: unbiased, divide by N-1 (guard the degenerate N==1).
    denom = float(max(n_valid - 1, 1))
    var = jnp.sum(diff * diff, axis=-1, keepdims=True) / denom  # (TB, 1)
    std = jnp.maximum(jnp.sqrt(var), 1e-8)
    o_ref[...] = (diff * pl.reciprocal(std)).astype(o_ref.dtype)


def _round_up(v: int, m: int) -> int:
    return -(-v // m) * m


def standardization_layer(x: jax.Array) -> jax.Array:
    """Per-sample standardization over (C, H, W). x: (B, C, H, W)."""
    B, C, H, W = x.shape
    F = C * H * W
    Fp = _round_up(F, 128)                      # lane-dense feature dim

    # Rows per grid step: multiple of 8 (full sublanes), sized so one f32
    # block buffer stays around ~2 MiB (4 double-buffered blocks < 8 MiB,
    # comfortably inside every generation's default scoped VMEM).
    target_block_bytes = 2 * 1024 * 1024
    tb = (target_block_bytes // (Fp * 4)) // 8 * 8
    tb = max(8, min(tb, _round_up(B, 8)))
    # TODO(synk): for samples too large for one VMEM block (huge C*H*W), switch
    # to a two-phase stats+normalize scheme splitting the feature axis.

    Bp = _round_up(B, tb)

    x2 = x.reshape(B, F)
    if Bp != B or Fp != F:
        x2 = jnp.pad(x2, ((0, Bp - B), (0, Fp - F)))

    itemsize = jnp.dtype(x.dtype).itemsize
    cost = pl.CostEstimate(
        flops=5 * B * F,
        transcendentals=0,
        bytes_accessed=2 * B * F * itemsize,
    )

    out2 = pl.pallas_call(
        functools.partial(_standardize_kernel, n_valid=F),
        out_shape=jax.ShapeDtypeStruct((Bp, Fp), x.dtype),
        grid_spec=pltpu.PrefetchScalarGridSpec(
            num_scalar_prefetch=0,
            grid=(Bp // tb,),
            in_specs=[pl.BlockSpec((tb, Fp), lambda i: (i, 0))],
            out_specs=pl.BlockSpec((tb, Fp), lambda i: (i, 0)),
        ),
        compiler_params=pltpu.CompilerParams(
            dimension_semantics=("parallel",),
            vmem_limit_bytes=32 * 1024 * 1024,
        ),
        cost_estimate=cost,
    )(x2)

    return out2[:B, :F].reshape(B, C, H, W)


def _reference(x: jax.Array) -> jax.Array:
    x32 = x.astype(jnp.float32)
    mean = jnp.mean(x32, axis=(1, 2, 3), keepdims=True)
    var = jnp.var(x32, axis=(1, 2, 3), keepdims=True, ddof=1)
    std = jnp.maximum(jnp.sqrt(var), 1e-8)
    return ((x32 - mean) / std).astype(x.dtype)


if __name__ == "__main__":
    key = jax.random.PRNGKey(0)
    x = jax.random.normal(key, (2, 4, 16, 16), dtype=jnp.float32) * 3.0 + 1.5

    out = standardization_layer(x)
    out = jax.block_until_ready(out)

    ref = _reference(x)
    assert out.shape == x.shape and out.dtype == x.dtype
    assert jnp.allclose(out, ref, atol=1e-5, rtol=1e-5), "mismatch vs reference"

    print("KERNEL_OK")
</pallas_src>

<mosaic_0001>
module attributes {stable_mosaic.version = 11 : i64} {
  func.func @_standardize_kernel(%arg0: i32, %arg1: memref<8x1024xf32, #tpu.memory_space<vmem>>, %arg2: memref<8x1024xf32, #tpu.memory_space<vmem>>) attributes {dimension_semantics = [#tpu.dimension_semantics<parallel>], iteration_bounds = array<i64: 1>, scalar_prefetch = 0 : i64, scratch_operands = 0 : i64, tpu.core_type = #tpu.core_type<tc>, window_params = [{transform_indices = @transform_0, window_bounds = array<i64: 8, 1024>}, {transform_indices = @transform_1, window_bounds = array<i64: 8, 1024>}]} {
    %c0 = arith.constant 0 : index
    %c0_0 = arith.constant 0 : index
    %0 = vector.load %arg1[%c0, %c0_0] : memref<8x1024xf32, #tpu.memory_space<vmem>>, vector<8x1024xf32>
    %cst = arith.constant dense<0.000000e+00> : vector<8xf32>
    %1 = vector.multi_reduction <add>, %0, %cst [1] : vector<8x1024xf32> to vector<8xf32>
    %2 = vector.shape_cast %1 : vector<8xf32> to vector<8x1xf32>
    %cst_1 = arith.constant 9.765625E-4 : f32
    %3 = vector.broadcast %cst_1 : f32 to vector<8x1xf32>
    %4 = arith.mulf %2, %3 : vector<8x1xf32>
    %5 = vector.broadcast %4 : vector<8x1xf32> to vector<8x1024xf32>
    %6 = arith.subf %0, %5 : vector<8x1024xf32>
    %7 = arith.mulf %6, %6 : vector<8x1024xf32>
    %cst_2 = arith.constant dense<0.000000e+00> : vector<8xf32>
    %8 = vector.multi_reduction <add>, %7, %cst_2 [1] : vector<8x1024xf32> to vector<8xf32>
    %9 = vector.shape_cast %8 : vector<8xf32> to vector<8x1xf32>
    %cst_3 = arith.constant 1.023000e+03 : f32
    %10 = vector.broadcast %cst_3 : f32 to vector<8x1xf32>
    %11 = arith.divf %9, %10 : vector<8x1xf32>
    %12 = math.sqrt %11 : vector<8x1xf32>
    %cst_4 = arith.constant 9.99999993E-9 : f32
    %13 = vector.broadcast %cst_4 : f32 to vector<8x1xf32>
    %14 = arith.maximumf %12, %13 : vector<8x1xf32>
    %15 = tpu.reciprocal %14 : vector<8x1xf32> -> vector<8x1xf32>
    %16 = vector.broadcast %15 : vector<8x1xf32> to vector<8x1024xf32>
    %17 = arith.mulf %6, %16 : vector<8x1024xf32>
    %c0_5 = arith.constant 0 : index
    %c0_6 = arith.constant 0 : index
    %18 = vector.load %arg2[%c0_5, %c0_6] : memref<8x1024xf32, #tpu.memory_space<vmem>>, vector<8x1024xf32>
    tpu.vector_store %arg2[%c0_5, %c0_6], %17 {strides = array<i32>} : memref<8x1024xf32, #tpu.memory_space<vmem>>, vector<8x1024xf32>,
    return
  }
  func.func @transform_0(%arg0: i32) -> (i32, i32) {
    %c0_i32 = arith.constant 0 : i32
    %c0_i32_0 = arith.constant 0 : i32
    return %arg0, %c0_i32 : i32, i32
  }
  func.func @transform_1(%arg0: i32) -> (i32, i32) {
    %c0_i32 = arith.constant 0 : i32
    %c0_i32_0 = arith.constant 0 : i32
    return %arg0, %c0_i32 : i32, i32
  }
}

</mosaic_0001>

<llo_original>
// kernel: tpu_custom_call.1
$region0: #{tpu_custom_call.1}
  #allocation0 [shape = 'u32[]', space=smem, size = 0x4, offset = 0x4, fixed_abs, tag = 'smem constant byte address 0x4 - core index']
  #allocation1 [shape = 'u32[72,128]{1,0:T(1,128)}', space=vmem, size = 0x9000, scoped, tag = 'internal scratch']
  %s0 = inlined_call_operand.hbm [shape: f32[8,1024], index: 0, kind: input, shape index: {}]
  %s1 = inlined_call_operand.hbm [shape: f32[8,1024], index: 1, kind: output, shape index: {}]
  %s2 = sld [smem:[#allocation0]]
  $region18: #{tpu_custom_call.1} parent=0
    _
  %s4 = ssub.s32 1, %s2
  %s5 = scalar_select 0, %s4, %s2
  $region1: #{tpu_custom_call.1} parent=0
    #allocation2 [shape = 'u8[32768]{0}', space=vmem, size = 0x8000, scoped, tag = 'input window, operand 0, single buffered']
    #allocation3 [shape = 's32[1]{0}', space=sflag, size = 0x4, scoped, tag = 'scoped memory for tpu_custom_call.1']
    #allocation4 [shape = 's32[1]{0}', space=sflag, size = 0x4, scoped, tag = 'scoped memory for tpu_custom_call.1']
    #allocation5 [shape = 'u8[32768]{0}', space=vmem, size = 0x8000, scoped, tag = 'output window, operand 0, single buffered']
    %6 = vsyncpa [#allocation3], 0
    %7 = vsyncpa [#allocation4], 0
    // Predicated region
    $region2: #{tpu_custom_call.1} parent=1 // pred_check
      _
    $region3: #{tpu_custom_call.1} parent=1 // pred_check_branch
      %9 = sbr.rel (0) target = $region5
    $region4: #{tpu_custom_call.1} parent=1 // pred_region
      %11 = vsyncadd [#allocation3], 0
      %s13 = sshll.u32 %s0, 4
      %s14 = int_to_ptr.hbm [resolvable:$true] %s13
      %s15 = sshll.u32 [#allocation2], 4
      %s16 = int_to_ptr.vmem [resolvable:$true] %s15
      %18 = dma.hbm_to_vmem [thread:$0]  %s14, 1024, %s16, [#allocation3]
    $region5: #{tpu_custom_call.1} parent=1 // pred_fallthru
      _
    // Predicated region
    $region6: #{tpu_custom_call.1} parent=1 // pred_check
      _
    $region7: #{tpu_custom_call.1} parent=1 // pred_check_branch
      %20 = sbr.rel (0) target = $region9
    $region8: #{tpu_custom_call.1} parent=1 // pred_region
      %22 = dma.done [#allocation3], 1024
    $region9: #{tpu_custom_call.1} parent=1 // pred_fallthru
      _
    %v23 = vld [vmem:[#allocation2] sm:$0xff]
    %v24 = vld [vmem:[#allocation2 + $0x8] sm:$0xff]
    %v25 = vld [vmem:[#allocation2 + $0x10] sm:$0xff]
    %v26 = vld [vmem:[#allocation2 + $0x18] sm:$0xff]
    %v27 = vld [vmem:[#allocation2 + $0x20] sm:$0xff]
    %v28 = vld [vmem:[#allocation2 + $0x28] sm:$0xff]
    %v29 = vld [vmem:[#allocation2 + $0x30] sm:$0xff]
    %v30 = vld [vmem:[#allocation2 + $0x38] sm:$0xff]
    %v31 = vadd.f32 %v23, %v24
    %v32 = vadd.f32 %v31, %v25
    %v33 = vadd.f32 %v32, %v26
    %v34 = vadd.f32 %v33, %v27
    %v35 = vadd.f32 %v34, %v28
    %v36 = vadd.f32 %v35, %v29
    %v37 = vadd.f32 %v36, %v30
    %38 = vadd.xlane.f32.xlu0 %v37
    %v39 = vpop.xlane.xlu0 %38
    %v40 = vmul.f32 %v39, 0.0009765625
    %v41 = vsub.f32 %v23, %v40
    %v42 = vsub.f32 %v24, %v40
    %v43 = vsub.f32 %v25, %v40
    %v44 = vsub.f32 %v26, %v40
    %v45 = vsub.f32 %v27, %v40
    %v46 = vsub.f32 %v28, %v40
    %v47 = vsub.f32 %v29, %v40
    %v48 = vsub.f32 %v30, %v40
    %v49 = vmul.f32 %v41, %v41
    %v50 = vmul.f32 %v42, %v42
    %v51 = vmul.f32 %v43, %v43
    %v52 = vmul.f32 %v44, %v44
    %v53 = vmul.f32 %v45, %v45
    %v54 = vmul.f32 %v46, %v46
    %v55 = vmul.f32 %v47, %v47
    %v56 = vmul.f32 %v48, %v48
    %v57 = vadd.f32 %v49, %v50
    %v58 = vadd.f32 %v57, %v51
    %v59 = vadd.f32 %v58, %v52
    %v60 = vadd.f32 %v59, %v53
    %v61 = vadd.f32 %v60, %v54
    %v62 = vadd.f32 %v61, %v55
    %v63 = vadd.f32 %v62, %v56
    %64 = vadd.xlane.f32.xlu0 %v63
    %v65 = vpop.xlane.xlu0 %64
    %v66 = vrcp.pop 1023.0
    %v67 = vmul.f32 1023.0, %v66
    %v68 = vsub.f32 1.0, %v67
    %v69 = vmul.f32 %v66, %v68
    %v70 = vadd.f32 %v66, %v69
    %vm71 = vweird.f32 %v66
    %v72 = vsel %vm71, %v66, %v70
    %v73 = vmul.f32 %v65, %v72
    %v74 = vrsqrt.pop %v73
    %v75 = vmul.f32 %v74, %v73
    %v76 = vmul.f32 %v75, %v74
    %v77 = vmul.f32 0.5, %v76
    %v78 = vsub.f32 1.5, %v77
    %v79 = vmul.f32 %v74, %v78
    %v80 = vmul.f32 %v73, %v79
    %vm81 = vcmp.eq.f32.partialorder %v73, inf
    %v82 = vsel %vm81, %v73, %v80
    %vm83 = vcmp.eq.f32.partialorder %v73, 0.0
    %v84 = vand.u32 %v73, 2147483648
    %v85 = vsel %vm83, %v84, %v82
    %v86 = vmax.f32 %v85, 1e-08
    %v87 = vrcp.pop %v86
    %v88 = vmul.f32 %v86, %v87
    %v89 = vsub.f32 1.0, %v88
    %v90 = vmul.f32 %v87, %v89
    %v91 = vadd.f32 %v87, %v90
    %vm92 = vweird.f32 %v86
    %vm93 = vweird.f32 %v87
    %vm94 = vmor %vm92, %vm93
    %v95 = vsel %vm94, %v87, %v91
    %v96 = vand.u32 2147483647, %v86
    %vm97 = vcmp.eq.f32.partialorder %v96, 8.507059e+37
    %v98 = vand.u32 %v86, 2147483648
    %v99 = vor.u32 1.1754944e-38, %v98
    %v100 = vsel %vm97, %v99, %v95
    %v101 = vmul.f32 %v41, %v100
    %v102 = vmul.f32 %v42, %v100
    %v103 = vmul.f32 %v43, %v100
    %v104 = vmul.f32 %v44, %v100
    %v105 = vmul.f32 %v45, %v100
    %v106 = vmul.f32 %v46, %v100
    %v107 = vmul.f32 %v47, %v100
    %v108 = vmul.f32 %v48, %v100
    %109 = vst [vmem:[#allocation5] sm:$0xff] %v101
    %110 = vst [vmem:[#allocation5 + $0x8] sm:$0xff] %v102
    %111 = vst [vmem:[#allocation5 + $0x10] sm:$0xff] %v103
    %112 = vst [vmem:[#allocation5 + $0x18] sm:$0xff] %v104
    %113 = vst [vmem:[#allocation5 + $0x20] sm:$0xff] %v105
    %114 = vst [vmem:[#allocation5 + $0x28] sm:$0xff] %v106
    %115 = vst [vmem:[#allocation5 + $0x30] sm:$0xff] %v107
    %116 = vst [vmem:[#allocation5 + $0x38] sm:$0xff] %v108
    // Predicated region
    $region10: #{tpu_custom_call.1} parent=1 // pred_check
      _
    $region11: #{tpu_custom_call.1} parent=1 // pred_check_branch
      %118 = sbr.rel (0) target = $region13
    $region12: #{tpu_custom_call.1} parent=1 // pred_region
      %120 = vsyncadd [#allocation4], 0
      %s122 = sshll.u32 [#allocation5], 4
      %s123 = int_to_ptr.vmem [resolvable:$true] %s122
      %s124 = sshll.u32 %s1, 4
      %s125 = int_to_ptr.hbm [resolvable:$true] %s124
      %127 = dma.vmem_to_hbm [thread:$0]  %s123, 1024, %s125, [#allocation4]
    $region13: #{tpu_custom_call.1} parent=1 // pred_fallthru
      _
    // Predicated region
    $region14: #{tpu_custom_call.1} parent=1 // pred_check
      _
    $region15: #{tpu_custom_call.1} parent=1 // pred_check_branch
      %129 = sbr.rel (0) target = $region17
    $region16: #{tpu_custom_call.1} parent=1 // pred_region
      %131 = dma.done [#allocation4], 1024
    $region17: #{tpu_custom_call.1} parent=1 // pred_fallthru
      _
    %132 = vsyncpa [#allocation3], 1
    %133 = vsyncpa [#allocation4], 1

</llo_original>
